<compile_context>
chip_gen: v7x
topology: tpu7x:2x2x1
jax: 0.10.0
libtpu: 0.0.40
codegen_flags: <defaults>
</compile_context>

<pallas_src>
import functools
import math

import jax
import jax.numpy as jnp
from jax import lax
from jax.experimental import pallas as pl
from jax.experimental.pallas import tpu as pltpu


def _cafm_kernel(q_ref, kt_ref, v_ref, gamma_ref, o_ref, acc_scr, m_scr, *,
                 n_real, tk, c_out, mask_keys, bf16_exp):
    # Grid: (batch, query-tile, key-tile); key-tile is the innermost reduction.
    ki = pl.program_id(2)
    nk = pl.num_programs(2)

    @pl.when(ki == 0)
    def _init():
        m_scr[...] = jnp.full_like(m_scr, -jnp.inf)
        acc_scr[...] = jnp.zeros_like(acc_scr)

    # sim^T tile: [tk, C] @ [C, tq] -> [tk, tq]  (bf16 operands, f32 acc).
    # Keys map to sublanes so the running softmax stats are lane-dense [1,tq].
    # K arrives pre-transposed -> no per-step XLU transpose.
    simT = jnp.dot(kt_ref[0], q_ref[0], preferred_element_type=jnp.float32)

    if mask_keys:  # compile-time flag: only emitted when N was padded.
        key_idx = ki * tk + lax.broadcasted_iota(jnp.int32, simT.shape, 0)
        simT = jnp.where(key_idx < n_real, simT, jnp.float32(-1e30))

    m_prev = m_scr[...]                                              # [1, tq]
    m_new = jnp.maximum(m_prev, jnp.max(simT, axis=0, keepdims=True))
    alpha = jnp.exp(m_prev - m_new)                                  # [1, tq]
    shifted = simT - m_new
    if bf16_exp:
        # v6e/v7x: EUP has a bf16 path; also removes a separate [tk,tq] cast.
        e = jnp.exp(shifted.astype(jnp.bfloat16))
    else:
        # v5e: no bf16 EUP -> keep exp in f32, cast only the matmul operand.
        e = jnp.exp(shifted).astype(jnp.bfloat16)
    m_scr[...] = m_new

    # v_ref carries an appended ones row, so this single MXU matmul also
    # accumulates the softmax denominator (row `c_out` of acc) in f32.
    acc_scr[...] = alpha * acc_scr[...] + jnp.dot(
        v_ref[0], e, preferred_element_type=jnp.float32)

    @pl.when(ki == nk - 1)
    def _finalize():
        inv_l = pl.reciprocal(acc_scr[c_out:c_out + 1, :], approx=True)
        o_ref[0] = (gamma_ref[0] * acc_scr[:c_out, :] * inv_l).astype(o_ref.dtype)


def _round_up(x, m):
    return ((x + m - 1) // m) * m


def cafm_forward(x, y, w_q, b_q, w_k, b_k, w_v, gamma, *, tq=None, tk=None):
    """x, y: NCHW float arrays.  w_*: [C_out, C_in] 1x1-conv weights, b_*: [C],
    gamma: scalar.  b_q/b_k are accepted for interface parity but cancel
    analytically under the spatial-mean subtraction (conv_value has no bias)."""
    B, C, H, W = x.shape
    N = H * W

    # --- generation-aware knobs --------------------------------------------
    kind = ""
    try:
        kind = jax.devices()[0].device_kind.lower()
    except Exception:
        pass
    if "v7" in kind:                      # 64 MiB VMEM/TC, 2 TCs
        budget, vmem_limit = 32 << 20, 48 << 20
        candidates = (512, 256, 128)
    elif "v6" in kind:                    # 128 MiB VMEM -> allow bigger tiles
        budget, vmem_limit = 80 << 20, 100 << 20
        candidates = (1024, 512, 256, 128)
    else:                                 # v5e / unknown: conservative
        budget, vmem_limit = 40 << 20, 64 << 20
        candidates = (512, 256, 128)
    bf16_exp = ("v6" in kind) or ("v7" in kind)   # v5e has no bf16 EUP

    # Channel dim of V padded with a ones row (softmax denominator) and
    # zero rows up to a sublane-aligned count.
    Cp = max(8, _round_up(C + 1, 8))

    def _vmem_est(tq_, tk_):
        bf, f = 2, 4
        blocks = 2 * (C * tq_ * bf + tk_ * C * bf + Cp * tk_ * bf + C * tq_ * f)
        scratch = Cp * tq_ * f + tq_ * f
        temps = tk_ * tq_ * (2 * f + bf)          # simT / shifted / e
        return blocks + scratch + temps

    if tq is None or tk is None:
        cap = max(128, _round_up(N, 128))
        t = 128
        for cand in sorted(candidates):
            if cand <= cap and _vmem_est(cand, cand) <= budget:
                t = cand
        if tq is None:
            tq = t
        if tk is None:
            tk = t
    assert tq % 128 == 0 and tk % 128 == 0, "tiles must be multiples of 128"

    n_pad = _round_up(N, math.lcm(tq, tk))
    pad_n = n_pad - N

    # --- hoisted projections (1x1 convs == channel matmuls) -----------------
    xf = x.reshape(B, C, N).astype(jnp.float32)
    yf = y.reshape(B, C, N).astype(jnp.float32)
    w_q32 = w_q.astype(jnp.float32)
    w_k32 = w_k.astype(jnp.float32)
    w_v32 = w_v.astype(jnp.float32)

    # Mean over the *real* spatial extent; conv biases cancel under centering.
    xc = xf - jnp.mean(xf, axis=2, keepdims=True)
    yc = yf - jnp.mean(yf, axis=2, keepdims=True)

    q = jnp.einsum("oc,bcn->bon", w_q32, xc).astype(jnp.bfloat16)    # [B,C,N]
    kT = jnp.einsum("oc,bcn->bno", w_k32, yc).astype(jnp.bfloat16)   # [B,N,C]
    v = jnp.einsum("oc,bcn->bon", w_v32, yf).astype(jnp.bfloat16)    # [B,C,N]

    if pad_n:
        q = jnp.pad(q, ((0, 0), (0, 0), (0, pad_n)))
        kT = jnp.pad(kT, ((0, 0), (0, pad_n), (0, 0)))
        v = jnp.pad(v, ((0, 0), (0, 0), (0, pad_n)))

    ones_row = jnp.ones((B, 1, n_pad), jnp.bfloat16)
    zero_rows = jnp.zeros((B, Cp - C - 1, n_pad), jnp.bfloat16)
    vp = jnp.concatenate([v, ones_row, zero_rows], axis=1)           # [B,Cp,n_pad]

    gamma1 = jnp.reshape(gamma, (1,)).astype(jnp.float32)

    grid = (B, n_pad // tq, n_pad // tk)

    kernel = functools.partial(
        _cafm_kernel, n_real=N, tk=tk, c_out=C,
        mask_keys=(pad_n != 0), bf16_exp=bf16_exp)

    out = pl.pallas_call(
        kernel,
        out_shape=jax.ShapeDtypeStruct((B, C, n_pad), jnp.float32),
        grid=grid,
        in_specs=[
            # Q block index is constant across ki -> stays resident in VMEM.
            pl.BlockSpec((1, C, tq), lambda b, qi, ki: (b, 0, qi)),   # Q  (bf16)
            pl.BlockSpec((1, tk, C), lambda b, qi, ki: (b, ki, 0)),   # K^T(bf16)
            pl.BlockSpec((1, Cp, tk), lambda b, qi, ki: (b, 0, ki)),  # V+ones
            pl.BlockSpec(memory_space=pltpu.MemorySpace.SMEM),        # gamma
        ],
        out_specs=pl.BlockSpec((1, C, tq), lambda b, qi, ki: (b, 0, qi)),
        scratch_shapes=[
            pltpu.VMEM((Cp, tq), jnp.float32),   # acc (row C carries denom l)
            pltpu.VMEM((1, tq), jnp.float32),    # running max
        ],
        compiler_params=pltpu.CompilerParams(
            dimension_semantics=("parallel", "parallel", "arbitrary"),
            vmem_limit_bytes=vmem_limit),
    )(q, kT, vp, gamma1)

    if pad_n:
        out = out[:, :, :N]
    return out.reshape(B, C, H, W)


def cafm_reference(x, y, w_q, b_q, w_k, b_k, w_v, gamma):
    """Pure-JAX reference mirroring the PyTorch forward (NCHW)."""
    B, C, H, W = x.shape
    N = H * W

    def conv1x1(inp, w, b=None):
        f = inp.reshape(B, C, N)
        o = jnp.einsum("oc,bcn->bon", w, f)
        if b is not None:
            o = o + b[None, :, None]
        return o

    value = conv1x1(y, w_v)                                        # [B, C, N]
    query = conv1x1(x, w_q, b_q)
    key = conv1x1(y, w_k, b_k)
    key = key - jnp.mean(key, axis=2, keepdims=True)
    query = query - jnp.mean(query, axis=2, keepdims=True)
    sim = jnp.einsum("bcn,bcm->bnm", query, key)                   # [B, N, N]
    sim = jax.nn.softmax(sim, axis=2)
    out = jnp.einsum("bnm,bcm->bnc", sim, value)                   # [B, N, C]
    out = jnp.transpose(out, (0, 2, 1)).reshape(B, C, H, W)
    return gamma * out


if __name__ == "__main__":
    key = jax.random.PRNGKey(0)
    kx, ky, kwq, kbq, kwk, kbk, kwv, kx2, ky2 = jax.random.split(key, 9)

    B, C, H, W = 2, 4, 16, 16
    x = jax.random.normal(kx, (B, C, H, W), dtype=jnp.float32)
    y = jax.random.normal(ky, (B, C, H, W), dtype=jnp.float32)

    w_q = 0.1 * jax.random.normal(kwq, (C, C), dtype=jnp.float32)
    b_q = 0.1 * jax.random.normal(kbq, (C,), dtype=jnp.float32)
    w_k = 0.1 * jax.random.normal(kwk, (C, C), dtype=jnp.float32)
    b_k = 0.1 * jax.random.normal(kbk, (C,), dtype=jnp.float32)
    w_v = 0.1 * jax.random.normal(kwv, (C, C), dtype=jnp.float32)
    # nn.Parameter(torch.zeros(1)) would make the output identically zero; use
    # a nonzero deterministic value so the comparison is meaningful.
    gamma = jnp.float32(0.5)

    ref = jax.block_until_ready(
        cafm_reference(x, y, w_q, b_q, w_k, b_k, w_v, gamma))

    # Auto tiles (single key tile) and explicit small tiles (multi-tile
    # online-softmax path).
    out_auto = jax.block_until_ready(
        cafm_forward(x, y, w_q, b_q, w_k, b_k, w_v, gamma))
    out_tiled = jax.block_until_ready(
        cafm_forward(x, y, w_q, b_q, w_k, b_k, w_v, gamma, tq=128, tk=128))

    assert out_auto.shape == (B, C, H, W)
    assert out_tiled.shape == (B, C, H, W)
    # bf16 Q/K/V + bf16 matmuls + approx reciprocal -> relaxed tolerance.
    assert jnp.allclose(out_auto, ref, atol=2e-2, rtol=2e-2), (
        float(jnp.max(jnp.abs(out_auto - ref))))
    assert jnp.allclose(out_tiled, ref, atol=2e-2, rtol=2e-2), (
        float(jnp.max(jnp.abs(out_tiled - ref))))

    # Non-128-divisible spatial extent -> exercises the pad-and-mask path.
    H2 = W2 = 12
    x2 = jax.random.normal(kx2, (B, C, H2, W2), dtype=jnp.float32)
    y2 = jax.random.normal(ky2, (B, C, H2, W2), dtype=jnp.float32)
    ref2 = jax.block_until_ready(
        cafm_reference(x2, y2, w_q, b_q, w_k, b_k, w_v, gamma))
    out2 = jax.block_until_ready(
        cafm_forward(x2, y2, w_q, b_q, w_k, b_k, w_v, gamma, tq=128, tk=128))
    assert out2.shape == (B, C, H2, W2)
    assert jnp.allclose(out2, ref2, atol=2e-2, rtol=2e-2), (
        float(jnp.max(jnp.abs(out2 - ref2))))

    print("KERNEL_OK")
</pallas_src>

<mosaic_0001>
module attributes {stable_mosaic.version = 11 : i64} {
  func.func @_cafm_kernel(%arg0: i32, %arg1: i32, %arg2: i32, %arg3: memref<1x4x256xbf16, #tpu.memory_space<vmem>>, %arg4: memref<1x256x4xbf16, #tpu.memory_space<vmem>>, %arg5: memref<1x8x256xbf16, #tpu.memory_space<vmem>>, %arg6: memref<1xf32, #tpu.memory_space<smem>>, %arg7: memref<1x4x256xf32, #tpu.memory_space<vmem>>, %arg8: memref<8x256xf32, #tpu.memory_space<vmem>>, %arg9: memref<1x256xf32, #tpu.memory_space<vmem>>) attributes {dimension_semantics = [#tpu.dimension_semantics<parallel>, #tpu.dimension_semantics<parallel>, #tpu.dimension_semantics<arbitrary>], iteration_bounds = array<i64: 2, 1, 1>, scalar_prefetch = 0 : i64, scratch_operands = 2 : i64, tpu.core_type = #tpu.core_type<tc>, window_params = [{transform_indices = @transform_0, window_bounds = array<i64: 1, 4, 256>}, {transform_indices = @transform_1, window_bounds = array<i64: 1, 256, 4>}, {transform_indices = @transform_2, window_bounds = array<i64: 1, 8, 256>}, {transform_indices = @transform_3, window_bounds = array<i64: 1>}, {transform_indices = @transform_4, window_bounds = array<i64: 1, 4, 256>}]} {
    %c0_i32 = arith.constant 0 : i32
    %0 = arith.cmpi eq, %arg2, %c0_i32 : i32
    %1 = arith.extui %0 : i1 to i32
    %c0_i32_0 = arith.constant 0 : i32
    %2 = arith.cmpi ne, %1, %c0_i32_0 : i32
    scf.if %2 {
      %cst_21 = arith.constant 0xFF800000 : f32
      %30 = vector.broadcast %cst_21 : f32 to vector<1x256xf32>
      %c0_22 = arith.constant 0 : index
      %c0_23 = arith.constant 0 : index
      %31 = vector.load %arg9[%c0_22, %c0_23] : memref<1x256xf32, #tpu.memory_space<vmem>>, vector<1x256xf32>
      tpu.vector_store %arg9[%c0_22, %c0_23], %30 {strides = array<i32>} : memref<1x256xf32, #tpu.memory_space<vmem>>, vector<1x256xf32>,
      %cst_24 = arith.constant 0.000000e+00 : f32
      %32 = vector.broadcast %cst_24 : f32 to vector<8x256xf32>
      %c0_25 = arith.constant 0 : index
      %c0_26 = arith.constant 0 : index
      %33 = vector.load %arg8[%c0_25, %c0_26] : memref<8x256xf32, #tpu.memory_space<vmem>>, vector<8x256xf32>
      tpu.vector_store %arg8[%c0_25, %c0_26], %32 {strides = array<i32>} : memref<8x256xf32, #tpu.memory_space<vmem>>, vector<8x256xf32>,
    } else {
    }
    %c0 = arith.constant 0 : index
    %c0_1 = arith.constant 0 : index
    %c0_2 = arith.constant 0 : index
    %3 = vector.load %arg4[%c0, %c0_1, %c0_2] : memref<1x256x4xbf16, #tpu.memory_space<vmem>>, vector<1x256x4xbf16>
    %4 = vector.shape_cast %3 : vector<1x256x4xbf16> to vector<256x4xbf16>
    %c0_3 = arith.constant 0 : index
    %c0_4 = arith.constant 0 : index
    %c0_5 = arith.constant 0 : index
    %5 = vector.load %arg3[%c0_3, %c0_4, %c0_5] : memref<1x4x256xbf16, #tpu.memory_space<vmem>>, vector<1x4x256xbf16>
    %6 = vector.shape_cast %5 : vector<1x4x256xbf16> to vector<4x256xbf16>
    %cst = arith.constant dense<0.000000e+00> : vector<256x256xf32>
    %7 = tpu.matmul %4, %6, %cst {dimension_numbers = #tpu.dot_dimension_numbers<[1], [0], [0], [1], [0, 0, 1, 1], [], []>} : vector<256x4xbf16>, vector<4x256xbf16>, vector<256x256xf32> -> vector<256x256xf32>
    %c0_6 = arith.constant 0 : index
    %c0_7 = arith.constant 0 : index
    %8 = vector.load %arg9[%c0_6, %c0_7] : memref<1x256xf32, #tpu.memory_space<vmem>>, vector<1x256xf32>
    %cst_8 = arith.constant dense<0xFF800000> : vector<256xf32>
    %9 = vector.multi_reduction <maximumf>, %7, %cst_8 [0] : vector<256x256xf32> to vector<256xf32>
    %10 = vector.shape_cast %9 : vector<256xf32> to vector<1x256xf32>
    %11 = arith.maximumf %8, %10 : vector<1x256xf32>
    %12 = arith.subf %8, %11 : vector<1x256xf32>
    %13 = math.exp %12 : vector<1x256xf32>
    %14 = vector.broadcast %11 : vector<1x256xf32> to vector<256x256xf32>
    %15 = arith.subf %7, %14 : vector<256x256xf32>
    %16 = math.exp %15 : vector<256x256xf32>
    %17 = arith.truncf %16 : vector<256x256xf32> to vector<256x256xbf16>
    %c0_9 = arith.constant 0 : index
    %c0_10 = arith.constant 0 : index
    %18 = vector.load %arg9[%c0_9, %c0_10] : memref<1x256xf32, #tpu.memory_space<vmem>>, vector<1x256xf32>
    tpu.vector_store %arg9[%c0_9, %c0_10], %11 {strides = array<i32>} : memref<1x256xf32, #tpu.memory_space<vmem>>, vector<1x256xf32>,
    %c0_11 = arith.constant 0 : index
    %c0_12 = arith.constant 0 : index
    %19 = vector.load %arg8[%c0_11, %c0_12] : memref<8x256xf32, #tpu.memory_space<vmem>>, vector<8x256xf32>
    %20 = vector.broadcast %13 : vector<1x256xf32> to vector<8x256xf32>
    %21 = arith.mulf %20, %19 : vector<8x256xf32>
    %c0_13 = arith.constant 0 : index
    %c0_14 = arith.constant 0 : index
    %c0_15 = arith.constant 0 : index
    %22 = vector.load %arg5[%c0_13, %c0_14, %c0_15] : memref<1x8x256xbf16, #tpu.memory_space<vmem>>, vector<1x8x256xbf16>
    %23 = vector.shape_cast %22 : vector<1x8x256xbf16> to vector<8x256xbf16>
    %cst_16 = arith.constant dense<0.000000e+00> : vector<8x256xf32>
    %24 = tpu.matmul %23, %17, %cst_16 {dimension_numbers = #tpu.dot_dimension_numbers<[1], [0], [0], [1], [0, 0, 1, 1], [], []>} : vector<8x256xbf16>, vector<256x256xbf16>, vector<8x256xf32> -> vector<8x256xf32>
    %25 = arith.addf %21, %24 : vector<8x256xf32>
    %c0_17 = arith.constant 0 : index
    %c0_18 = arith.constant 0 : index
    %26 = vector.load %arg8[%c0_17, %c0_18] : memref<8x256xf32, #tpu.memory_space<vmem>>, vector<8x256xf32>
    tpu.vector_store %arg8[%c0_17, %c0_18], %25 {strides = array<i32>} : memref<8x256xf32, #tpu.memory_space<vmem>>, vector<8x256xf32>,
    %c0_i32_19 = arith.constant 0 : i32
    %27 = arith.cmpi eq, %arg2, %c0_i32_19 : i32
    %28 = arith.extui %27 : i1 to i32
    %c0_i32_20 = arith.constant 0 : i32
    %29 = arith.cmpi ne, %28, %c0_i32_20 : i32
    scf.if %29 {
      %c4 = arith.constant 4 : index
      %c0_21 = arith.constant 0 : index
      %30 = vector.load %arg8[%c4, %c0_21] : memref<8x256xf32, #tpu.memory_space<vmem>>, vector<1x256xf32>
      %31 = tpu.reciprocal %30 {approx = true} : vector<1x256xf32> -> vector<1x256xf32>
      %c0_22 = arith.constant 0 : index
      %32 = memref.load %arg6[%c0_22] : memref<1xf32, #tpu.memory_space<smem>>
      %c0_23 = arith.constant 0 : index
      %c0_24 = arith.constant 0 : index
      %33 = vector.load %arg8[%c0_23, %c0_24] : memref<8x256xf32, #tpu.memory_space<vmem>>, vector<4x256xf32>
      %34 = vector.broadcast %32 : f32 to vector<4x256xf32>
      %35 = arith.mulf %34, %33 : vector<4x256xf32>
      %36 = vector.broadcast %31 : vector<1x256xf32> to vector<4x256xf32>
      %37 = arith.mulf %35, %36 : vector<4x256xf32>
      %c0_25 = arith.constant 0 : index
      %c0_26 = arith.constant 0 : index
      %c0_27 = arith.constant 0 : index
      %38 = vector.load %arg7[%c0_25, %c0_26, %c0_27] : memref<1x4x256xf32, #tpu.memory_space<vmem>>, vector<1x4x256xf32>
      %39 = vector.shape_cast %38 : vector<1x4x256xf32> to vector<4x256xf32>
      %40 = vector.shape_cast %37 : vector<4x256xf32> to vector<1x4x256xf32>
      tpu.vector_store %arg7[%c0_25, %c0_26, %c0_27], %40 {strides = array<i32>} : memref<1x4x256xf32, #tpu.memory_space<vmem>>, vector<1x4x256xf32>,
    } else {
    }
    return
  }
  func.func @transform_0(%arg0: i32, %arg1: i32, %arg2: i32) -> (i32, i32, i32) {
    %c0_i32 = arith.constant 0 : i32
    %c0_i32_0 = arith.constant 0 : i32
    return %arg0, %c0_i32, %arg1 : i32, i32, i32
  }
  func.func @transform_1(%arg0: i32, %arg1: i32, %arg2: i32) -> (i32, i32, i32) {
    %c0_i32 = arith.constant 0 : i32
    %c0_i32_0 = arith.constant 0 : i32
    return %arg0, %arg2, %c0_i32 : i32, i32, i32
  }
  func.func @transform_2(%arg0: i32, %arg1: i32, %arg2: i32) -> (i32, i32, i32) {
    %c0_i32 = arith.constant 0 : i32
    %c0_i32_0 = arith.constant 0 : i32
    return %arg0, %c0_i32, %arg2 : i32, i32, i32
  }
  func.func @transform_3(%arg0: i32, %arg1: i32, %arg2: i32) -> i32 {
    %c0_i32 = arith.constant 0 : i32
    %c0_i32_0 = arith.constant 0 : i32
    return %c0_i32 : i32
  }
  func.func @transform_4(%arg0: i32, %arg1: i32, %arg2: i32) -> (i32, i32, i32) {
    %c0_i32 = arith.constant 0 : i32
    %c0_i32_0 = arith.constant 0 : i32
    return %arg0, %c0_i32, %arg1 : i32, i32, i32
  }
}

</mosaic_0001>

<llo_original>
// kernel: tpu_custom_call.1
$region0: #{tpu_custom_call.1}
  #allocation0 [shape = 'u32[]', space=smem, size = 0x4, offset = 0x4, fixed_abs, tag = 'smem constant byte address 0x4 - core index']
  #allocation1 [shape = 'u32[144,128]{1,0:T(1,128)}', space=vmem, size = 0x12000, scoped, tag = 'internal scratch']
  #allocation2 [shape = 'f32[8,256]{1,0:T(8,128)}', space=vmem, size = 0x2000, scoped, tag = 'scratch operand']
  #allocation3 [shape = 'f32[1,256]{1,0:T(1,128)}', space=vmem, size = 0x400, scoped, tag = 'scratch operand']
  #allocation4 [shape = 'f32[1]{0:T(128)S(6)}', space=smem, size = 0x200, scoped, tag = 'scoped memory for tpu_custom_call.1']
  %s0 = inlined_call_operand.hbm [shape: bf16[2,4,256], index: 0, kind: input, shape index: {}]
  %s1 = inlined_call_operand.hbm [shape: bf16[2,256,4], index: 1, kind: input, shape index: {}]
  %s2 = inlined_call_operand.hbm [shape: bf16[2,8,256], index: 2, kind: input, shape index: {}]
  %s3 = inlined_call_operand.<no memory space> [shape: f32[1], index: 3, kind: input, shape index: {}]
  %s4 = inlined_call_operand.hbm [shape: f32[2,4,256], index: 4, kind: output, shape index: {}]
  %s5 = sld [smem:[#allocation0]]
  $region69: #{tpu_custom_call.1} parent=0
    _
  %s7 = ssub.s32 1, %s5
  %s8 = scalar_select 0, %s7, %s5
  %9 = sst [smem:[#allocation4]] %s3
  $region1: #{tpu_custom_call.1} parent=0
    #allocation5 [shape = 'u8[4096]{0}', space=vmem, size = 0x1000, scoped, tag = 'input window, operand 0']
    #allocation6 [shape = 's32[2]{0}', space=sflag, size = 0x8, scoped, tag = 'scoped memory for tpu_custom_call.1']
    #allocation7 [shape = 's32[2]{0}', space=sflag, size = 0x8, scoped, tag = 'scoped memory for tpu_custom_call.1']
    #allocation8 [shape = 'u8[131072]{0}', space=vmem, size = 0x20000, scoped, tag = 'input window, operand 1']
    #allocation9 [shape = 's32[2]{0}', space=sflag, size = 0x8, scoped, tag = 'scoped memory for tpu_custom_call.1']
    #allocation10 [shape = 'u8[8192]{0}', space=vmem, size = 0x2000, scoped, tag = 'input window, operand 2']
    #allocation11 [shape = 'u8[8192]{0}', space=vmem, size = 0x2000, scoped, tag = 'output window, operand 0']
    %10 = vsyncpa [#allocation6], 0
    %s11 = scalar_lea.sflag [#allocation6], 1
    %12 = vsyncpa %s11, 0
    %13 = vsyncpa [#allocation9], 0
    %s14 = scalar_lea.sflag [#allocation9], 1
    %15 = vsyncpa %s14, 0
    %16 = vsyncpa [#allocation7], 0
    %s17 = scalar_lea.sflag [#allocation7], 1
    %18 = vsyncpa %s17, 0
    loop: start=0, step=1, limit=4
    $region2: #{tpu_custom_call.1} parent=1 // loop_pre_header
      _
    $region3: #{tpu_custom_call.1} parent=1 // loop_header
      %s20 = sphi 0, %s24
      %p21 = scmp.ge.s32.totalorder %s20, 4
      %s27 = sphi 0, %s46
      %s28 = sphi 0, %s42
      %s29 = sphi 0, %s38
      %s30 = sphi 0, %s27
      %s31 = sphi 0, %s28
      %s32 = sphi 0, %s29
      %s33 = sphi 0, %s30
      %s34 = sphi 0, %s31
      %s35 = sphi 0, %s32
      %s51 = sphi 0, %s53
      %s54 = sphi 0, %s51
      %s55 = sphi 0, %s54
      %s71 = sphi 0, %s55
      %s79 = sphi 0, %s81
      %s82 = sphi 0, %s79
      %s83 = sphi 0, %s82
      %s99 = sphi 0, %s83
      %s107 = sphi 0, %s109
      %s110 = sphi 0, %s107
      %s111 = sphi 0, %s110
      %s127 = sphi 0, %s111
      %s131 = sphi 0, %s131
      %s133 = sphi 0, %s131
      %s134 = sphi 0, %s133
      %s148 = sphi 0, %s134
      %s156 = sphi 0, %s158
      %s159 = sphi 0, %s156
      %s160 = sphi 0, %s159
      %s176 = sphi 0, %s160
    $region4: #{tpu_custom_call.1} parent=1 // loop_header_branch
      %23 = sbr.rel (%p21) target = $region8
    $region5: #{tpu_custom_call.1} parent=1 // loop_body
      %s25 = ssub.s32 %s20, 1
      %s26 = ssub.s32 %s20, 2
      %s36 = sadd.s32 1, %s29
      %p37 = scmp.ge.s32.totalorder %s36, 1
      %s38 = scalar_select %p37, 0, %s36
      %s39 = sadd.s32 1, %s28
      %s40 = scalar_select %p37, %s39, %s28
      %p41 = scmp.ge.s32.totalorder %s40, 1
      %s42 = scalar_select %p41, 0, %s40
      %s43 = sadd.s32 1, %s27
      %s44 = scalar_select %p41, %s43, %s27
      %p45 = scmp.ge.s32.totalorder %s44, 2
      %s46 = scalar_select %p45, 0, %s44
      %s47 = ssub.s32 %s27, %s46
      %s48 = ssub.s32 %s28, %s42
      %s49 = sor.u32 %s47, %s48
      %p50 = scmp.eq.s32.totalorder %s49, 0
      %s52 = sadd.s32 %s51, 1
      %s53 = scalar_select %p50, %s51, %s52
      %p56 = pneg %p50
      %p57 = scmp.eq.s32.totalorder %s20, 1
      %p58 = por %p56, %p57
      %p59 = scmp.ne.s32.totalorder %s51, %s54
      %p60 = scmp.eq.s32.totalorder %s20, 0
      %p61 = por %p59, %p60
      %p62 = scmp.ne.s32.totalorder %s51, %s54
      %p63 = scmp.eq.s32.totalorder %s25, 1
      %p64 = por %p62, %p63
      %p65 = scmp.ne.s32.totalorder %s54, %s55
      %p66 = scmp.eq.s32.totalorder %s25, 0
      %p67 = por %p65, %p66
      %p68 = scmp.ne.s32.totalorder %s54, %s55
      %p69 = scmp.eq.s32.totalorder %s26, 1
      %p70 = por %p68, %p69
      %p72 = scmp.ne.s32.totalorder %s55, %s71
      %p73 = scmp.eq.s32.totalorder %s26, 0
      %p74 = por %p72, %p73
      %s75 = ssub.s32 %s27, %s46
      %s76 = ssub.s32 %s29, %s38
      %s77 = sor.u32 %s75, %s76
      %p78 = scmp.eq.s32.totalorder %s77, 0
      %s80 = sadd.s32 %s79, 1
      %s81 = scalar_select %p78, %s79, %s80
      %p84 = pneg %p78
      %p85 = scmp.eq.s32.totalorder %s20, 1
      %p86 = por %p84, %p85
      %p87 = scmp.ne.s32.totalorder %s79, %s82
      %p88 = scmp.eq.s32.totalorder %s20, 0
      %p89 = por %p87, %p88
      %p90 = scmp.ne.s32.totalorder %s79, %s82
      %p91 = scmp.eq.s32.totalorder %s25, 1
      %p92 = por %p90, %p91
      %p93 = scmp.ne.s32.totalorder %s82, %s83
      %p94 = scmp.eq.s32.totalorder %s25, 0
      %p95 = por %p93, %p94
      %p96 = scmp.ne.s32.totalorder %s82, %s83
      %p97 = scmp.eq.s32.totalorder %s26, 1
      %p98 = por %p96, %p97
      %p100 = scmp.ne.s32.totalorder %s83, %s99
      %p101 = scmp.eq.s32.totalorder %s26, 0
      %p102 = por %p100, %p101
      %s103 = ssub.s32 %s27, %s46
      %s104 = ssub.s32 %s29, %s38
      %s105 = sor.u32 %s103, %s104
      %p106 = scmp.eq.s32.totalorder %s105, 0
      %s108 = sadd.s32 %s107, 1
      %s109 = scalar_select %p106, %s107, %s108
      %p112 = pneg %p106
      %p113 = scmp.eq.s32.totalorder %s20, 1
      %p114 = por %p112, %p113
      %p115 = scmp.ne.s32.totalorder %s107, %s110
      %p116 = scmp.eq.s32.totalorder %s20, 0
      %p117 = por %p115, %p116
      %p118 = scmp.ne.s32.totalorder %s107, %s110
      %p119 = scmp.eq.s32.totalorder %s25, 1
      %p120 = por %p118, %p119
      %p121 = scmp.ne.s32.totalorder %s110, %s111
      %p122 = scmp.eq.s32.totalorder %s25, 0
      %p123 = por %p121, %p122
      %p124 = scmp.ne.s32.totalorder %s110, %s111
      %p125 = scmp.eq.s32.totalorder %s26, 1
      %p126 = por %p124, %p125
      %p128 = scmp.ne.s32.totalorder %s111, %s127
      %p129 = scmp.eq.s32.totalorder %s26, 0
      %p130 = por %p128, %p129
      %s132 = sadd.s32 %s131, 1
      %p135 = scmp.eq.s32.totalorder %s20, 1
      %p136 = scmp.ne.s32.totalorder %s131, %s133
      %p137 = scmp.eq.s32.totalorder %s20, 0
      %p138 = por %p136, %p137
      %p139 = scmp.ne.s32.totalorder %s131, %s133
      %p140 = scmp.eq.s32.totalorder %s25, 1
      %p141 = por %p139, %p140
      %p142 = scmp.ne.s32.totalorder %s133, %s134
      %p143 = scmp.eq.s32.totalorder %s25, 0
      %p144 = por %p142, %p143
      %p145 = scmp.ne.s32.totalorder %s133, %s134
      %p146 = scmp.eq.s32.totalorder %s26, 1
      %p147 = por %p145, %p146
      %p149 = scmp.ne.s32.totalorder %s134, %s148
      %p150 = scmp.eq.s32.totalorder %s26, 0
      %p151 = por %p149, %p150
      %s152 = ssub.s32 %s27, %s46
      %s153 = ssub.s32 %s28, %s42
      %s154 = sor.u32 %s152, %s153
      %p155 = scmp.eq.s32.totalorder %s154, 0
      %s157 = sadd.s32 %s156, 1
      %s158 = scalar_select %p155, %s156, %s157
      %p161 = pneg %p155
      %p162 = scmp.eq.s32.totalorder %s20, 1
      %p163 = por %p161, %p162
      %p164 = scmp.ne.s32.totalorder %s156, %s159
      %p165 = scmp.eq.s32.totalorder %s20, 0
      %p166 = por %p164, %p165
      %p167 = scmp.ne.s32.totalorder %s156, %s159
      %p168 = scmp.eq.s32.totalorder %s25, 1
      %p169 = por %p167, %p168
      %p170 = scmp.ne.s32.totalorder %s159, %s160
      %p171 = scmp.eq.s32.totalorder %s25, 0
      %p172 = por %p170, %p171
      %p173 = scmp.ne.s32.totalorder %s159, %s160
      %p174 = scmp.eq.s32.totalorder %s26, 1
      %p175 = por %p173, %p174
      %p177 = scmp.ne.s32.totalorder %s160, %s176
      %p178 = scmp.eq.s32.totalorder %s26, 0
      %p179 = por %p177, %p178
      %p180 = scmp.le.s32.totalorder 1, %s20
      %p181 = scmp.lt.s32.totalorder %s20, 3
      %p182 = pnand %p180, %p181
      %p183 = pneg %p182
      // Predicated region
      $region9: #{tpu_custom_call.1} parent=5 // pred_check
        _
      $region10: #{tpu_custom_call.1} parent=5 // pred_check_branch
        %185 = sbr.rel (%p182) target = $region12
      $region11: #{tpu_custom_call.1} parent=5 // pred_region
        %s186 = ssub.s32 %s20, 1
        // Predicated region
        $region13: #{tpu_custom_call.1} parent=11 // pred_check
          %p187 = pneg %p144
        $region14: #{tpu_custom_call.1} parent=11 // pred_check_branch
          %189 = sbr.rel (%p187) target = $region16
        $region15: #{tpu_custom_call.1} parent=11 // pred_region
          _
        $region16: #{tpu_custom_call.1} parent=11 // pred_fallthru
          _
      $region12: #{tpu_custom_call.1} parent=5 // pred_fallthru
        _
      %p190 = scmp.lt.s32.totalorder %s20, 2
      // Predicated region
      $region17: #{tpu_custom_call.1} parent=5 // pred_check
        %p191 = pneg %p190
      $region18: #{tpu_custom_call.1} parent=5 // pred_check_branch
        %193 = sbr.rel (%p191) target = $region20
      $region19: #{tpu_custom_call.1} parent=5 // pred_region
        // Predicated region
        $region21: #{tpu_custom_call.1} parent=19 // pred_check
          %p194 = pneg %p61
        $region22: #{tpu_custom_call.1} parent=19 // pred_check_branch
          %196 = sbr.rel (%p194) target = $region24
        $region23: #{tpu_custom_call.1} parent=19 // pred_region
          %s197 = sand.u32 %s51, 1
          %s198 = scalar_lea.sflag [#allocation6], %s197
          %s199 = sand.u32 %s51, 1
          %s200 = smul.addr %s199, 4
          %s201 = scalar_lea.vmem [#allocation5], %s200
          %s202 = smul.u32 2, %s28
          %s204 = ssub.s32 64, 64
          %205 = vsyncadd %s198, %s204
          %s206 = smul.addr %s27, 2
          %s207 = sadd.s32 %s202, %s206
          %s208 = smul.addr %s207, 32
          %s209 = scalar_lea.hbm %s0, %s208
          %s211 = sshll.u32 %s201, 4
          %s212 = int_to_ptr.vmem [resolvable:$true] %s211
          %214 = dma.hbm_to_vmem [thread:$0]  %s209, 64, %s212, %s198
        $region24: #{tpu_custom_call.1} parent=19 // pred_fallthru
          _
        // Predicated region
        $region25: #{tpu_custom_call.1} parent=19 // pred_check
          %p215 = pneg %p89
        $region26: #{tpu_custom_call.1} parent=19 // pred_check_branch
          %217 = sbr.rel (%p215) target = $region28
        $region27: #{tpu_custom_call.1} parent=19 // pred_region
          %s218 = sand.u32 %s20, 1
          %s219 = scalar_lea.sflag [#allocation9], %s218
          %s220 = sand.u32 %s79, 1
          %s221 = smul.addr %s220, 128
          %s222 = scalar_lea.vmem [#allocation8], %s221
          %s223 = smul.u32 32, %s29
          %s225 = ssub.s32 2048, 2048
          %226 = vsyncadd %s219, %s225
          %s227 = smul.addr %s27, 32
          %s228 = sadd.s32 %s223, %s227
          %s229 = smul.addr %s228, 64
          %s230 = scalar_lea.hbm %s1, %s229
          %s231 = sshll.u32 %s222, 4
          %s232 = int_to_ptr.vmem [resolvable:$true] %s231
          %237 = dma.hbm_to_vmem [thread:$0]  %s230, 2048, %s232, %s219, 64, 64, 4
        $region28: #{tpu_custom_call.1} parent=19 // pred_fallthru
          _
        // Predicated region
        $region29: #{tpu_custom_call.1} parent=19 // pred_check
          %p238 = pneg %p117
        $region30: #{tpu_custom_call.1} parent=19 // pred_check_branch
          %240 = sbr.rel (%p238) target = $region32
        $region31: #{tpu_custom_call.1} parent=19 // pred_region
          %s241 = sand.u32 %s20, 1
          %s242 = scalar_lea.sflag [#allocation9], %s241
          %s243 = sand.u32 %s107, 1
          %s244 = smul.addr %s243, 8
          %s245 = scalar_lea.vmem [#allocation10], %s244
          %s246 = smul.u32 2, %s29
          %s248 = ssub.s32 128, 128
          %249 = vsyncadd %s242, %s248
          %s250 = smul.addr %s27, 2
          %s251 = sadd.s32 %s246, %s250
          %s252 = smul.addr %s251, 64
          %s253 = scalar_lea.hbm %s2, %s252
          %s255 = sshll.u32 %s245, 4
          %s256 = int_to_ptr.vmem [resolvable:$true] %s255
          %258 = dma.hbm_to_vmem [thread:$0]  %s253, 128, %s256, %s242
        $region32: #{tpu_custom_call.1} parent=19 // pred_fallthru
          _
      $region20: #{tpu_custom_call.1} parent=5 // pred_fallthru
        _
      %p259 = scmp.le.s32.totalorder 1, %s20
      %p260 = scmp.lt.s32.totalorder %s20, 3
      %p261 = pnand %p259, %p260
      %p262 = pneg %p261
      // Predicated region
      $region33: #{tpu_custom_call.1} parent=5 // pred_check
        _
      $region34: #{tpu_custom_call.1} parent=5 // pred_check_branch
        %264 = sbr.rel (%p261) target = $region36
      $region35: #{tpu_custom_call.1} parent=5 // pred_region
        %s265 = ssub.s32 %s20, 1
        %s266 = sand.u32 %s54, 1
        %s267 = scalar_lea.sflag [#allocation6], %s266
        %s268 = sand.u32 %s54, 1
        %s269 = smul.addr %s268, 4
        %s270 = scalar_lea.vmem [#allocation5], %s269
        // Predicated region
        $region37: #{tpu_custom_call.1} parent=35 // pred_check
          %p271 = pneg %p67
        $region38: #{tpu_custom_call.1} parent=35 // pred_check_branch
          %273 = sbr.rel (%p271) target = $region40
        $region39: #{tpu_custom_call.1} parent=35 // pred_region
          %274 = dma.done %s267, 64
        $region40: #{tpu_custom_call.1} parent=35 // pred_fallthru
          _
        %s275 = sand.u32 %s25, 1
        %s276 = scalar_lea.sflag [#allocation9], %s275
        %s277 = sand.u32 %s82, 1
        %s278 = smul.addr %s277, 128
        %s279 = scalar_lea.vmem [#allocation8], %s278
        // Predicated region
        $region41: #{tpu_custom_call.1} parent=35 // pred_check
          %p280 = pneg %p95
        $region42: #{tpu_custom_call.1} parent=35 // pred_check_branch
          %282 = sbr.rel (%p280) target = $region44
        $region43: #{tpu_custom_call.1} parent=35 // pred_region
          %283 = dma.done %s276, 2048
        $region44: #{tpu_custom_call.1} parent=35 // pred_fallthru
          _
        %s284 = sand.u32 %s25, 1
        %s285 = scalar_lea.sflag [#allocation9], %s284
        %s286 = sand.u32 %s110, 1
        %s287 = smul.addr %s286, 8
        %s288 = scalar_lea.vmem [#allocation10], %s287
        // Predicated region
        $region45: #{tpu_custom_call.1} parent=35 // pred_check
          %p289 = pneg %p123
        $region46: #{tpu_custom_call.1} parent=35 // pred_check_branch
          %291 = sbr.rel (%p289) target = $region48
        $region47: #{tpu_custom_call.1} parent=35 // pred_region
          %292 = dma.done %s285, 128
        $region48: #{tpu_custom_call.1} parent=35 // pred_fallthru
          _
        %s293 = sand.u32 %s54, 1
        %s294 = scalar_lea.sflag [#allocation6], %s293
        %s295 = sand.u32 %s54, 1
        %s296 = smul.addr %s295, 4
        %s297 = scalar_lea.vmem [#allocation5], %s296
        %p298 = pneg %p67
        %p299 = pneg %p64
        %s300 = sand.u32 %s25, 1
        %s301 = scalar_lea.sflag [#allocation9], %s300
        %s302 = sand.u32 %s82, 1
        %s303 = smul.addr %s302, 128
        %s304 = scalar_lea.vmem [#allocation8], %s303
        %p305 = pneg %p95
        %p306 = pneg %p92
        %s307 = sand.u32 %s25, 1
        %s308 = scalar_lea.sflag [#allocation9], %s307
        %s309 = sand.u32 %s110, 1
        %s310 = smul.addr %s309, 8
        %s311 = scalar_lea.vmem [#allocation10], %s310
        %p312 = pneg %p123
        %p313 = pneg %p120
        %p314 = pneg %p144
        %p315 = pneg %p141
        %p316 = pneg %p172
        %p317 = pneg %p169
        %s318 = sand.u32 %s159, 1
        %s319 = scalar_lea.sflag [#allocation7], %s318
        %s320 = sand.u32 %s159, 1
        %s321 = smul.addr %s320, 8
        %s322 = scalar_lea.vmem [#allocation11], %s321
        %s323 = smul.u32 2, %s31
        %s324 = smul.u32 32, %s32
        %s325 = smul.u32 2, %s32
        %s326 = smul.u32 2, %s31
        %p328 = scmp.eq.s32.totalorder %s32, 0
        // Predicated region
        $region49: #{tpu_custom_call.1} parent=35 // pred_check
          %p329 = pneg %p328
        $region50: #{tpu_custom_call.1} parent=35 // pred_check_branch
          %331 = sbr.rel (%p329) target = $region52
        $region51: #{tpu_custom_call.1} parent=35 // pred_region
          %v332 = vlaneseq
          %vm333 = vcmp.ge.s32.totalorder %v332, 0
          %vm334 = vcmp.lt.s32.totalorder %v332, 256
          %vm335 = vmand %vm333, %vm334
          %336 = vst.msk [vmem:[#allocation3] sm:$0x3] %vm335, -inf
          %337 = vst [vmem:[#allocation2] sm:$0xff] 0.0
          %338 = vst [vmem:[#allocation2 + $0x8] sm:$0xff] 0.0
        $region52: #{tpu_custom_call.1} parent=35 // pred_fallthru
          _
        %v339 = vld [vmem:[%s279] sm:$0xf]
        %v340 = vld [vmem:[%s279 + $0x4] sm:$0xf]
        %v341 = vld [vmem:[%s279 + $0x8] sm:$0xf]
        %v342 = vld [vmem:[%s279 + $0xc] sm:$0xf]
        %v343 = vld [vmem:[%s279 + $0x10] sm:$0xf]
        %v344 = vld [vmem:[%s279 + $0x14] sm:$0xf]
        %v345 = vld [vmem:[%s279 + $0x18] sm:$0xf]
        %v346 = vld [vmem:[%s279 + $0x1c] sm:$0xf]
        %v347 = vld [vmem:[%s279 + $0x20] sm:$0xf]
        %v348 = vld [vmem:[%s279 + $0x24] sm:$0xf]
        %v349 = vld [vmem:[%s279 + $0x28] sm:$0xf]
        %v350 = vld [vmem:[%s279 + $0x2c] sm:$0xf]
        %v351 = vld [vmem:[%s279 + $0x30] sm:$0xf]
        %v352 = vld [vmem:[%s279 + $0x34] sm:$0xf]
        %v353 = vld [vmem:[%s279 + $0x38] sm:$0xf]
        %v354 = vld [vmem:[%s279 + $0x3c] sm:$0xf]
        %v355 = vld [vmem:[%s279 + $0x40] sm:$0xf]
        %v356 = vld [vmem:[%s279 + $0x44] sm:$0xf]
        %v357 = vld [vmem:[%s279 + $0x48] sm:$0xf]
        %v358 = vld [vmem:[%s279 + $0x4c] sm:$0xf]
        %v359 = vld [vmem:[%s279 + $0x50] sm:$0xf]
        %v360 = vld [vmem:[%s279 + $0x54] sm:$0xf]
        %v361 = vld [vmem:[%s279 + $0x58] sm:$0xf]
        %v362 = vld [vmem:[%s279 + $0x5c] sm:$0xf]
        %v363 = vld [vmem:[%s279 + $0x60] sm:$0xf]
        %v364 = vld [vmem:[%s279 + $0x64] sm:$0xf]
        %v365 = vld [vmem:[%s279 + $0x68] sm:$0xf]
        %v366 = vld [vmem:[%s279 + $0x6c] sm:$0xf]
        %v367 = vld [vmem:[%s279 + $0x70] sm:$0xf]
        %v368 = vld [vmem:[%s279 + $0x74] sm:$0xf]
        %v369 = vld [vmem:[%s279 + $0x78] sm:$0xf]
        %v370 = vld [vmem:[%s279 + $0x7c] sm:$0xf]
        %v371 = vld [vmem:[%s270] sm:$0xf]
        %v404 = vunpack.c.l.b16 %v339
        %v405 = vunpack.c.l.b16 %v340
        %v406 = vunpack.c.l.b16 %v341
        %v407 = vunpack.c.l.b16 %v342
        %v408 = vunpack.c.l.b16 %v343
        %v409 = vunpack.c.l.b16 %v344
        %v410 = vunpack.c.l.b16 %v345
        %v411 = vunpack.c.l.b16 %v346
        %v412 = vunpack.c.l.b16 %v347
        %v413 = vunpack.c.l.b16 %v348
        %v414 = vunpack.c.l.b16 %v349
        %v415 = vunpack.c.l.b16 %v350
        %v416 = vunpack.c.l.b16 %v351
        %v417 = vunpack.c.l.b16 %v352
        %v418 = vunpack.c.l.b16 %v353
        %v419 = vunpack.c.l.b16 %v354
        %v420 = vunpack.c.l.b16 %v355
        %v421 = vunpack.c.l.b16 %v356
        %v422 = vunpack.c.l.b16 %v357
        %v423 = vunpack.c.l.b16 %v358
        %v424 = vunpack.c.l.b16 %v359
        %v425 = vunpack.c.l.b16 %v360
        %v426 = vunpack.c.l.b16 %v361
        %v427 = vunpack.c.l.b16 %v362
        %v428 = vunpack.c.l.b16 %v363
        %v429 = vunpack.c.l.b16 %v364
        %v430 = vunpack.c.l.b16 %v365
        %v431 = vunpack.c.l.b16 %v366
        %v432 = vunpack.c.l.b16 %v367
        %v433 = vunpack.c.l.b16 %v368
        %v434 = vunpack.c.l.b16 %v369
        %v435 = vunpack.c.l.b16 %v370
        %v436 = vpack.c.b16 %v405, %v404
        %v437 = vpack.c.b16 %v407, %v406
        %v438 = vpack.c.b16 %v409, %v408
        %v439 = vpack.c.b16 %v411, %v410
        %v440 = vpack.c.b16 %v413, %v412
        %v441 = vpack.c.b16 %v415, %v414
        %v442 = vpack.c.b16 %v417, %v416
        %v443 = vpack.c.b16 %v419, %v418
        %v444 = vpack.c.b16 %v421, %v420
        %v445 = vpack.c.b16 %v423, %v422
        %v446 = vpack.c.b16 %v425, %v424
        %v447 = vpack.c.b16 %v427, %v426
        %v448 = vpack.c.b16 %v429, %v428
        %v449 = vpack.c.b16 %v431, %v430
        %v450 = vpack.c.b16 %v433, %v432
        %v451 = vpack.c.b16 %v435, %v434
        %v454 = vunpack.c.l.s4 1983009808
        %v455 = vunpack.c.0.s8 %v454
        %v456 = vlaneseq
        %v457 = vshrl.u32 %v456, 7
        %v458 = vsub.s32 %v455, %v457
        %v459 = vrot.slane %v371, %v458
        %v460 = vcombine.high %v459, %v459
        %vm461 = vcmask 31744
        %v463 = vsel %vm461, %v436, 0
        %v466 = vsel %vm461, %v437, 0
        %v469 = vsel %vm461, %v438, 0
        %v472 = vsel %vm461, %v439, 0
        %v475 = vsel %vm461, %v440, 0
        %v478 = vsel %vm461, %v441, 0
        %v481 = vsel %vm461, %v442, 0
        %v484 = vsel %vm461, %v443, 0
        %v487 = vsel %vm461, %v444, 0
        %v490 = vsel %vm461, %v445, 0
        %v493 = vsel %vm461, %v446, 0
        %v496 = vsel %vm461, %v447, 0
        %v499 = vsel %vm461, %v448, 0
        %v502 = vsel %vm461, %v449, 0
        %v505 = vsel %vm461, %v450, 0
        %v508 = vsel %vm461, %v451, 0
        %vm510 = vcmask 1041408
        %v512 = vsel %vm510, %v459, 0
        %v515 = vsel %vm510, %v460, 0
        %517 = vmatprep.subr.bf16.mxu0 %v515
        %518 = vmatpush1.bf16.msra.mxu0 %v512
        %519 = vmatprep.subr.bf16.mxu0 0
        %520 = vmatpush1.bf16.msra.mxu0 0
        %521 = vmatprep.subr.bf16.mxu0 0
        %522 = vmatpush1.bf16.msra.mxu0 0
        %523 = vmatprep.subr.bf16.mxu0 0
        %524 = vmatpush1.bf16.msra.mxu0 0
        %525 = vmatprep.subr.bf16.mxu0 0
        %526 = vmatpush1.bf16.msra.mxu0 0
        %527 = vmatprep.subr.bf16.mxu0 0
        %528 = vmatpush1.bf16.msra.mxu0 0
        %529 = vmatprep.subr.bf16.mxu0 0
        %530 = vmatpush1.bf16.msra.mxu0 0
        %531 = vmatprep.subr.bf16.mxu0 0
        %532 = vmatpush1.bf16.msra.mxu0 0
        %533 = vmatprep.subr.bf16.mxu0 0
        %534 = vmatpush1.bf16.msra.mxu0 0
        %535 = vmatprep.subr.bf16.mxu0 0
        %536 = vmatpush1.bf16.msra.mxu0 0
        %537 = vmatprep.subr.bf16.mxu0 0
        %538 = vmatpush1.bf16.msra.mxu0 0
        %539 = vmatprep.subr.bf16.mxu0 0
        %540 = vmatpush1.bf16.msra.mxu0 0
        %541 = vmatprep.subr.bf16.mxu0 0
        %542 = vmatpush1.bf16.msra.mxu0 0
        %543 = vmatprep.subr.bf16.mxu0 0
        %544 = vmatpush1.bf16.msra.mxu0 0
        %545 = vmatprep.subr.bf16.mxu0 0
        %546 = vmatpush1.bf16.msra.mxu0 0
        %547 = vmatprep.subr.bf16.mxu0 0
        %548 = vmatpush1.bf16.msra.mxu0 0
        %549 = vmatprep.mubr.bf16.mxu0 0
        %550 = vmatmul.mubr.bf16.gmra.mrb[0].mxu0 %v463
        %v551 = vpop.f32.mrb[0].mxu0
        %v552 = vadd.f32 0.0, %v551
        %v553 = vpop.f32.mrb[0].mxu0
        %v554 = vadd.f32 0.0, %v553
        %v555 = vpop.f32.mrb[0].mxu0
        %v556 = vadd.f32 0.0, %v555
        %v557 = vpop.f32.mrb[0].mxu0
        %v558 = vadd.f32 0.0, %v557
        %559 = vmatprep.mubr.bf16.mxu0 0
        %560 = vmatmul.mubr.bf16.gmra.mrb[0].mxu0 %v466
        %v561 = vpop.f32.mrb[0].mxu0
        %v562 = vadd.f32 0.0, %v561
        %v563 = vpop.f32.mrb[0].mxu0
        %v564 = vadd.f32 0.0, %v563
        %v565 = vpop.f32.mrb[0].mxu0
        %v566 = vadd.f32 0.0, %v565
        %v567 = vpop.f32.mrb[0].mxu0
        %v568 = vadd.f32 0.0, %v567
        %569 = vmatprep.mubr.bf16.mxu0 0
        %570 = vmatmul.mubr.bf16.gmra.mrb[0].mxu0 %v469
        %v571 = vpop.f32.mrb[0].mxu0
        %v572 = vadd.f32 0.0, %v571
        %v573 = vpop.f32.mrb[0].mxu0
        %v574 = vadd.f32 0.0, %v573
        %v575 = vpop.f32.mrb[0].mxu0
        %v576 = vadd.f32 0.0, %v575
        %v577 = vpop.f32.mrb[0].mxu0
        %v578 = vadd.f32 0.0, %v577
        %579 = vmatprep.mubr.bf16.mxu0 0
        %580 = vmatmul.mubr.bf16.gmra.mrb[0].mxu0 %v472
        %v581 = vpop.f32.mrb[0].mxu0
        %v582 = vadd.f32 0.0, %v581
        %v583 = vpop.f32.mrb[0].mxu0
        %v584 = vadd.f32 0.0, %v583
        %v585 = vpop.f32.mrb[0].mxu0
        %v586 = vadd.f32 0.0, %v585
        %v587 = vpop.f32.mrb[0].mxu0
        %v588 = vadd.f32 0.0, %v587
        %589 = vmatprep.mubr.bf16.mxu0 0
        %590 = vmatmul.mubr.bf16.gmra.mrb[0].mxu0 %v475
        %v591 = vpop.f32.mrb[0].mxu0
        %v592 = vadd.f32 0.0, %v591
        %v593 = vpop.f32.mrb[0].mxu0
        %v594 = vadd.f32 0.0, %v593
        %v595 = vpop.f32.mrb[0].mxu0
        %v596 = vadd.f32 0.0, %v595
        %v597 = vpop.f32.mrb[0].mxu0
        %v598 = vadd.f32 0.0, %v597
        %599 = vmatprep.mubr.bf16.mxu0 0
        %600 = vmatmul.mubr.bf16.gmra.mrb[0].mxu0 %v478
        %v601 = vpop.f32.mrb[0].mxu0
        %v602 = vadd.f32 0.0, %v601
        %v603 = vpop.f32.mrb[0].mxu0
        %v604 = vadd.f32 0.0, %v603
        %v605 = vpop.f32.mrb[0].mxu0
        %v606 = vadd.f32 0.0, %v605
        %v607 = vpop.f32.mrb[0].mxu0
        %v608 = vadd.f32 0.0, %v607
        %609 = vmatprep.mubr.bf16.mxu0 0
        %610 = vmatmul.mubr.bf16.gmra.mrb[0].mxu0 %v481
        %v611 = vpop.f32.mrb[0].mxu0
        %v612 = vadd.f32 0.0, %v611
        %v613 = vpop.f32.mrb[0].mxu0
        %v614 = vadd.f32 0.0, %v613
        %v615 = vpop.f32.mrb[0].mxu0
        %v616 = vadd.f32 0.0, %v615
        %v617 = vpop.f32.mrb[0].mxu0
        %v618 = vadd.f32 0.0, %v617
        %619 = vmatprep.mubr.bf16.mxu0 0
        %620 = vmatmul.mubr.bf16.gmra.mrb[0].mxu0 %v484
        %v621 = vpop.f32.mrb[0].mxu0
        %v622 = vadd.f32 0.0, %v621
        %v623 = vpop.f32.mrb[0].mxu0
        %v624 = vadd.f32 0.0, %v623
        %v625 = vpop.f32.mrb[0].mxu0
        %v626 = vadd.f32 0.0, %v625
        %v627 = vpop.f32.mrb[0].mxu0
        %v628 = vadd.f32 0.0, %v627
        %629 = vmatprep.mubr.bf16.mxu0 0
        %630 = vmatmul.mubr.bf16.gmra.mrb[0].mxu0 %v487
        %v631 = vpop.f32.mrb[0].mxu0
        %v632 = vadd.f32 0.0, %v631
        %v633 = vpop.f32.mrb[0].mxu0
        %v634 = vadd.f32 0.0, %v633
        %v635 = vpop.f32.mrb[0].mxu0
        %v636 = vadd.f32 0.0, %v635
        %v637 = vpop.f32.mrb[0].mxu0
        %v638 = vadd.f32 0.0, %v637
        %639 = vmatprep.mubr.bf16.mxu0 0
        %640 = vmatmul.mubr.bf16.gmra.mrb[0].mxu0 %v490
        %v641 = vpop.f32.mrb[0].mxu0
        %v642 = vadd.f32 0.0, %v641
        %v643 = vpop.f32.mrb[0].mxu0
        %v644 = vadd.f32 0.0, %v643
        %v645 = vpop.f32.mrb[0].mxu0
        %v646 = vadd.f32 0.0, %v645
        %v647 = vpop.f32.mrb[0].mxu0
        %v648 = vadd.f32 0.0, %v647
        %649 = vmatprep.mubr.bf16.mxu0 0
        %650 = vmatmul.mubr.bf16.gmra.mrb[0].mxu0 %v493
        %v651 = vpop.f32.mrb[0].mxu0
        %v652 = vadd.f32 0.0, %v651
        %v653 = vpop.f32.mrb[0].mxu0
        %v654 = vadd.f32 0.0, %v653
        %v655 = vpop.f32.mrb[0].mxu0
        %v656 = vadd.f32 0.0, %v655
        %v657 = vpop.f32.mrb[0].mxu0
        %v658 = vadd.f32 0.0, %v657
        %659 = vmatprep.mubr.bf16.mxu0 0
        %660 = vmatmul.mubr.bf16.gmra.mrb[0].mxu0 %v496
        %v661 = vpop.f32.mrb[0].mxu0
        %v662 = vadd.f32 0.0, %v661
        %v663 = vpop.f32.mrb[0].mxu0
        %v664 = vadd.f32 0.0, %v663
        %v665 = vpop.f32.mrb[0].mxu0
        %v666 = vadd.f32 0.0, %v665
        %v667 = vpop.f32.mrb[0].mxu0
        %v668 = vadd.f32 0.0, %v667
        %669 = vmatprep.mubr.bf16.mxu0 0
        %670 = vmatmul.mubr.bf16.gmra.mrb[0].mxu0 %v499
        %v671 = vpop.f32.mrb[0].mxu0
        %v672 = vadd.f32 0.0, %v671
        %v673 = vpop.f32.mrb[0].mxu0
        %v674 = vadd.f32 0.0, %v673
        %v675 = vpop.f32.mrb[0].mxu0
        %v676 = vadd.f32 0.0, %v675
        %v677 = vpop.f32.mrb[0].mxu0
        %v678 = vadd.f32 0.0, %v677
        %679 = vmatprep.mubr.bf16.mxu0 0
        %680 = vmatmul.mubr.bf16.gmra.mrb[0].mxu0 %v502
        %v681 = vpop.f32.mrb[0].mxu0
        %v682 = vadd.f32 0.0, %v681
        %v683 = vpop.f32.mrb[0].mxu0
        %v684 = vadd.f32 0.0, %v683
        %v685 = vpop.f32.mrb[0].mxu0
        %v686 = vadd.f32 0.0, %v685
        %v687 = vpop.f32.mrb[0].mxu0
        %v688 = vadd.f32 0.0, %v687
        %689 = vmatprep.mubr.bf16.mxu0 0
        %690 = vmatmul.mubr.bf16.gmra.mrb[0].mxu0 %v505
        %v691 = vpop.f32.mrb[0].mxu0
        %v692 = vadd.f32 0.0, %v691
        %v693 = vpop.f32.mrb[0].mxu0
        %v694 = vadd.f32 0.0, %v693
        %v695 = vpop.f32.mrb[0].mxu0
        %v696 = vadd.f32 0.0, %v695
        %v697 = vpop.f32.mrb[0].mxu0
        %v698 = vadd.f32 0.0, %v697
        %699 = vmatprep.mubr.bf16.mxu0 0
        %700 = vmatmul.mubr.bf16.gmra.mrb[0].mxu0 %v508
        %v701 = vpop.f32.mrb[0].mxu0
        %v702 = vadd.f32 0.0, %v701
        %v703 = vpop.f32.mrb[0].mxu0
        %v704 = vadd.f32 0.0, %v703
        %v705 = vpop.f32.mrb[0].mxu0
        %v706 = vadd.f32 0.0, %v705
        %v707 = vpop.f32.mrb[0].mxu0
        %v708 = vadd.f32 0.0, %v707
        %709 = vdwg.mxu0
        %v710 = vld [vmem:[#allocation3] sm:$0x3]
        %v711 = vmax.f32 %v552, %v562
        %v712 = vmax.f32 %v556, %v566
        %v713 = vmax.f32 %v711, %v572
        %v714 = vmax.f32 %v712, %v576
        %v715 = vmax.f32 %v713, %v582
        %v716 = vmax.f32 %v714, %v586
        %v717 = vmax.f32 %v715, %v592
        %v718 = vmax.f32 %v716, %v596
        %v719 = vmax.f32 %v717, %v602
        %v720 = vmax.f32 %v718, %v606
        %v721 = vmax.f32 %v719, %v612
        %v722 = vmax.f32 %v720, %v616
        %v723 = vmax.f32 %v721, %v622
        %v724 = vmax.f32 %v722, %v626
        %v725 = vmax.f32 %v723, %v632
        %v726 = vmax.f32 %v724, %v636
        %v727 = vmax.f32 %v725, %v642
        %v728 = vmax.f32 %v726, %v646
        %v729 = vmax.f32 %v727, %v652
        %v730 = vmax.f32 %v728, %v656
        %v731 = vmax.f32 %v729, %v662
        %v732 = vmax.f32 %v730, %v666
        %v733 = vmax.f32 %v731, %v672
        %v734 = vmax.f32 %v732, %v676
        %v735 = vmax.f32 %v733, %v682
        %v736 = vmax.f32 %v734, %v686
        %v737 = vmax.f32 %v735, %v692
        %v738 = vmax.f32 %v736, %v696
        %v739 = vmax.f32 %v737, %v702
        %v740 = vmax.f32 %v738, %v706
        %v741 = vmax.f32 %v739, %v740
        %v742 = vrot.slane %v741, 4
        %v743 = vmax.f32 %v741, %v742
        %v744 = vrot.slane %v743, 2
        %v745 = vmax.f32 %v743, %v744
        %v746 = vrot.slane %v745, 1
        %v747 = vmax.f32 %v745, %v746
        %v748 = vmax.f32 %v554, %v564
        %v749 = vmax.f32 %v558, %v568
        %v750 = vmax.f32 %v748, %v574
        %v751 = vmax.f32 %v749, %v578
        %v752 = vmax.f32 %v750, %v584
        %v753 = vmax.f32 %v751, %v588
        %v754 = vmax.f32 %v752, %v594
        %v755 = vmax.f32 %v753, %v598
        %v756 = vmax.f32 %v754, %v604
        %v757 = vmax.f32 %v755, %v608
        %v758 = vmax.f32 %v756, %v614
        %v759 = vmax.f32 %v757, %v618
        %v760 = vmax.f32 %v758, %v624
        %v761 = vmax.f32 %v759, %v628
        %v762 = vmax.f32 %v760, %v634
        %v763 = vmax.f32 %v761, %v638
        %v764 = vmax.f32 %v762, %v644
        %v765 = vmax.f32 %v763, %v648
        %v766 = vmax.f32 %v764, %v654
        %v767 = vmax.f32 %v765, %v658
        %v768 = vmax.f32 %v766, %v664
        %v769 = vmax.f32 %v767, %v668
        %v770 = vmax.f32 %v768, %v674
        %v771 = vmax.f32 %v769, %v678
        %v772 = vmax.f32 %v770, %v684
        %v773 = vmax.f32 %v771, %v688
        %v774 = vmax.f32 %v772, %v694
        %v775 = vmax.f32 %v773, %v698
        %v776 = vmax.f32 %v774, %v704
        %v777 = vmax.f32 %v775, %v708
        %v778 = vmax.f32 %v776, %v777
        %v779 = vrot.slane %v778, 4
        %v780 = vmax.f32 %v778, %v779
        %v781 = vrot.slane %v780, 2
        %v782 = vmax.f32 %v780, %v781
        %v783 = vrot.slane %v782, 1
        %v784 = vmax.f32 %v782, %v783
        %v787 = vcombine.low %v747, %v784
        %v789 = vunpack.c.l.s4 1966171168
        %v790 = vunpack.c.0.s8 %v789
        %v791 = vlaneseq
        %v792 = vshrl.u32 %v791, 7
        %v793 = vsub.s32 %v790, %v792
        %v794 = vrot.slane %v787, %v793
        %v796 = vunpack.c.l.s4 1966171168
        %v797 = vunpack.c.0.s8 %v796
        %v798 = vlaneseq
        %v799 = vshrl.u32 %v798, 7
        %v800 = vsub.s32 %v797, %v799
        %v801 = vrot.slane %v794, %v800
        %v803 = vmax.f32 %v710, %v801
        %v804 = vsub.f32 %v710, %v803
        %v805 = vmul.f32 %v804, 1.442695
        %v806 = vpow.pop %v805
        %v808 = vlaneseq
        %v809 = vshrl.u32 %v808, 7
        %v810 = vsub.s32 0, %v809
        %v811 = vrot.slane %v803, %v810
        %v812 = vlaneseq
        %v813 = vshrl.u32 %v812, 7
        %v814 = vsub.s32 1, %v813
        %v815 = vrot.slane %v803, %v814
        %v818 = vsub.f32 %v552, %v811
        %v819 = vsub.f32 %v554, %v815
        %v820 = vsub.f32 %v556, %v811
        %v821 = vsub.f32 %v558, %v815
        %v822 = vsub.f32 %v562, %v811
        %v823 = vsub.f32 %v564, %v815
        %v824 = vsub.f32 %v566, %v811
        %v825 = vsub.f32 %v568, %v815
        %v826 = vsub.f32 %v572, %v811
        %v827 = vsub.f32 %v574, %v815
        %v828 = vsub.f32 %v576, %v811
        %v829 = vsub.f32 %v578, %v815
        %v830 = vsub.f32 %v582, %v811
        %v831 = vsub.f32 %v584, %v815
        %v832 = vsub.f32 %v586, %v811
        %v833 = vsub.f32 %v588, %v815
        %v834 = vsub.f32 %v592, %v811
        %v835 = vsub.f32 %v594, %v815
        %v836 = vsub.f32 %v596, %v811
        %v837 = vsub.f32 %v598, %v815
        %v838 = vsub.f32 %v602, %v811
        %v839 = vsub.f32 %v604, %v815
        %v840 = vsub.f32 %v606, %v811
        %v841 = vsub.f32 %v608, %v815
        %v842 = vsub.f32 %v612, %v811
        %v843 = vsub.f32 %v614, %v815
        %v844 = vsub.f32 %v616, %v811
        %v845 = vsub.f32 %v618, %v815
        %v846 = vsub.f32 %v622, %v811
        %v847 = vsub.f32 %v624, %v815
        %v848 = vsub.f32 %v626, %v811
        %v849 = vsub.f32 %v628, %v815
        %v850 = vsub.f32 %v632, %v811
        %v851 = vsub.f32 %v634, %v815
        %v852 = vsub.f32 %v636, %v811
        %v853 = vsub.f32 %v638, %v815
        %v854 = vsub.f32 %v642, %v811
        %v855 = vsub.f32 %v644, %v815
        %v856 = vsub.f32 %v646, %v811
        %v857 = vsub.f32 %v648, %v815
        %v858 = vsub.f32 %v652, %v811
        %v859 = vsub.f32 %v654, %v815
        %v860 = vsub.f32 %v656, %v811
        %v861 = vsub.f32 %v658, %v815
        %v862 = vsub.f32 %v662, %v811
        %v863 = vsub.f32 %v664, %v815
        %v864 = vsub.f32 %v666, %v811
        %v865 = vsub.f32 %v668, %v815
        %v866 = vsub.f32 %v672, %v811
        %v867 = vsub.f32 %v674, %v815
        %v868 = vsub.f32 %v676, %v811
        %v869 = vsub.f32 %v678, %v815
        %v870 = vsub.f32 %v682, %v811
        %v871 = vsub.f32 %v684, %v815
        %v872 = vsub.f32 %v686, %v811
        %v873 = vsub.f32 %v688, %v815
        %v874 = vsub.f32 %v692, %v811
        %v875 = vsub.f32 %v694, %v815
        %v876 = vsub.f32 %v696, %v811
        %v877 = vsub.f32 %v698, %v815
        %v878 = vsub.f32 %v702, %v811
        %v879 = vsub.f32 %v704, %v815
        %v880 = vsub.f32 %v706, %v811
        %v881 = vsub.f32 %v708, %v815
        %v882 = vmul.f32 %v818, 1.442695
        %v883 = vpow.pop %v882
        %v884 = vmul.f32 %v819, 1.442695
        %v885 = vpow.pop %v884
        %v886 = vmul.f32 %v820, 1.442695
        %v887 = vpow.pop %v886
        %v888 = vmul.f32 %v821, 1.442695
        %v889 = vpow.pop %v888
        %v890 = vmul.f32 %v822, 1.442695
        %v891 = vpow.pop %v890
        %v892 = vmul.f32 %v823, 1.442695
        %v893 = vpow.pop %v892
        %v894 = vmul.f32 %v824, 1.442695
        %v895 = vpow.pop %v894
        %v896 = vmul.f32 %v825, 1.442695
        %v897 = vpow.pop %v896
        %v898 = vmul.f32 %v826, 1.442695
        %v899 = vpow.pop %v898
        %v900 = vmul.f32 %v827, 1.442695
        %v901 = vpow.pop %v900
        %v902 = vmul.f32 %v828, 1.442695
        %v903 = vpow.pop %v902
        %v904 = vmul.f32 %v829, 1.442695
        %v905 = vpow.pop %v904
        %v906 = vmul.f32 %v830, 1.442695
        %v907 = vpow.pop %v906
        %v908 = vmul.f32 %v831, 1.442695
        %v909 = vpow.pop %v908
        %v910 = vmul.f32 %v832, 1.442695
        %v911 = vpow.pop %v910
        %v912 = vmul.f32 %v833, 1.442695
        %v913 = vpow.pop %v912
        %v914 = vmul.f32 %v834, 1.442695
        %v915 = vpow.pop %v914
        %v916 = vmul.f32 %v835, 1.442695
        %v917 = vpow.pop %v916
        %v918 = vmul.f32 %v836, 1.442695
        %v919 = vpow.pop %v918
        %v920 = vmul.f32 %v837, 1.442695
        %v921 = vpow.pop %v920
        %v922 = vmul.f32 %v838, 1.442695
        %v923 = vpow.pop %v922
        %v924 = vmul.f32 %v839, 1.442695
        %v925 = vpow.pop %v924
        %v926 = vmul.f32 %v840, 1.442695
        %v927 = vpow.pop %v926
        %v928 = vmul.f32 %v841, 1.442695
        %v929 = vpow.pop %v928
        %v930 = vmul.f32 %v842, 1.442695
        %v931 = vpow.pop %v930
        %v932 = vmul.f32 %v843, 1.442695
        %v933 = vpow.pop %v932
        %v934 = vmul.f32 %v844, 1.442695
        %v935 = vpow.pop %v934
        %v936 = vmul.f32 %v845, 1.442695
        %v937 = vpow.pop %v936
        %v938 = vmul.f32 %v846, 1.442695
        %v939 = vpow.pop %v938
        %v940 = vmul.f32 %v847, 1.442695
        %v941 = vpow.pop %v940
        %v942 = vmul.f32 %v848, 1.442695
        %v943 = vpow.pop %v942
        %v944 = vmul.f32 %v849, 1.442695
        %v945 = vpow.pop %v944
        %v946 = vmul.f32 %v850, 1.442695
        %v947 = vpow.pop %v946
        %v948 = vmul.f32 %v851, 1.442695
        %v949 = vpow.pop %v948
        %v950 = vmul.f32 %v852, 1.442695
        %v951 = vpow.pop %v950
        %v952 = vmul.f32 %v853, 1.442695
        %v953 = vpow.pop %v952
        %v954 = vmul.f32 %v854, 1.442695
        %v955 = vpow.pop %v954
        %v956 = vmul.f32 %v855, 1.442695
        %v957 = vpow.pop %v956
        %v958 = vmul.f32 %v856, 1.442695
        %v959 = vpow.pop %v958
        %v960 = vmul.f32 %v857, 1.442695
        %v961 = vpow.pop %v960
        %v962 = vmul.f32 %v858, 1.442695
        %v963 = vpow.pop %v962
        %v964 = vmul.f32 %v859, 1.442695
        %v965 = vpow.pop %v964
        %v966 = vmul.f32 %v860, 1.442695
        %v967 = vpow.pop %v966
        %v968 = vmul.f32 %v861, 1.442695
        %v969 = vpow.pop %v968
        %v970 = vmul.f32 %v862, 1.442695
        %v971 = vpow.pop %v970
        %v972 = vmul.f32 %v863, 1.442695
        %v973 = vpow.pop %v972
        %v974 = vmul.f32 %v864, 1.442695
        %v975 = vpow.pop %v974
        %v976 = vmul.f32 %v865, 1.442695
        %v977 = vpow.pop %v976
        %v978 = vmul.f32 %v866, 1.442695
        %v979 = vpow.pop %v978
        %v980 = vmul.f32 %v867, 1.442695
        %v981 = vpow.pop %v980
        %v982 = vmul.f32 %v868, 1.442695
        %v983 = vpow.pop %v982
        %v984 = vmul.f32 %v869, 1.442695
        %v985 = vpow.pop %v984
        %v986 = vmul.f32 %v870, 1.442695
        %v987 = vpow.pop %v986
        %v988 = vmul.f32 %v871, 1.442695
        %v989 = vpow.pop %v988
        %v990 = vmul.f32 %v872, 1.442695
        %v991 = vpow.pop %v990
        %v992 = vmul.f32 %v873, 1.442695
        %v993 = vpow.pop %v992
        %v994 = vmul.f32 %v874, 1.442695
        %v995 = vpow.pop %v994
        %v996 = vmul.f32 %v875, 1.442695
        %v997 = vpow.pop %v996
        %v998 = vmul.f32 %v876, 1.442695
        %v999 = vpow.pop %v998
        %v1000 = vmul.f32 %v877, 1.442695
        %v1001 = vpow.pop %v1000
        %v1002 = vmul.f32 %v878, 1.442695
        %v1003 = vpow.pop %v1002
        %v1004 = vmul.f32 %v879, 1.442695
        %v1005 = vpow.pop %v1004
        %v1006 = vmul.f32 %v880, 1.442695
        %v1007 = vpow.pop %v1006
        %v1008 = vmul.f32 %v881, 1.442695
        %v1009 = vpow.pop %v1008
        %v1010 = vpack.c.bf16 %v887, %v883
        %v1011 = vpack.c.bf16 %v889, %v885
        %v1012 = vpack.c.bf16 %v895, %v891
        %v1013 = vpack.c.bf16 %v897, %v893
        %v1014 = vpack.c.bf16 %v903, %v899
        %v1015 = vpack.c.bf16 %v905, %v901
        %v1016 = vpack.c.bf16 %v911, %v907
        %v1017 = vpack.c.bf16 %v913, %v909
        %v1018 = vpack.c.bf16 %v919, %v915
        %v1019 = vpack.c.bf16 %v921, %v917
        %v1020 = vpack.c.bf16 %v927, %v923
        %v1021 = vpack.c.bf16 %v929, %v925
        %v1022 = vpack.c.bf16 %v935, %v931
        %v1023 = vpack.c.bf16 %v937, %v933
        %v1024 = vpack.c.bf16 %v943, %v939
        %v1025 = vpack.c.bf16 %v945, %v941
        %v1026 = vpack.c.bf16 %v951, %v947
        %v1027 = vpack.c.bf16 %v953, %v949
        %v1028 = vpack.c.bf16 %v959, %v955
        %v1029 = vpack.c.bf16 %v961, %v957
        %v1030 = vpack.c.bf16 %v967, %v963
        %v1031 = vpack.c.bf16 %v969, %v965
        %v1032 = vpack.c.bf16 %v975, %v971
        %v1033 = vpack.c.bf16 %v977, %v973
        %v1034 = vpack.c.bf16 %v983, %v979
        %v1035 = vpack.c.bf16 %v985, %v981
        %v1036 = vpack.c.bf16 %v991, %v987
        %v1037 = vpack.c.bf16 %v993, %v989
        %v1038 = vpack.c.bf16 %v999, %v995
        %v1039 = vpack.c.bf16 %v1001, %v997
        %v1040 = vpack.c.bf16 %v1007, %v1003
        %v1041 = vpack.c.bf16 %v1009, %v1005
        %v1042 = vlaneseq
        %vm1043 = vcmp.ge.s32.totalorder %v1042, 0
        %vm1044 = vcmp.lt.s32.totalorder %v1042, 256
        %vm1045 = vmand %vm1043, %vm1044
        %1046 = vst.msk [vmem:[#allocation3] sm:$0x3] %vm1045, %v803
        %v1047 = vld [vmem:[#allocation2] sm:$0xff]
        %v1048 = vld [vmem:[#allocation2 + $0x8] sm:$0xff]
        %v1050 = vlaneseq
        %v1051 = vshrl.u32 %v1050, 7
        %v1052 = vsub.s32 0, %v1051
        %v1053 = vrot.slane %v806, %v1052
        %v1054 = vlaneseq
        %v1055 = vshrl.u32 %v1054, 7
        %v1056 = vsub.s32 1, %v1055
        %v1057 = vrot.slane %v806, %v1056
        %v1060 = vmul.f32 %v1053, %v1047
        %v1061 = vmul.f32 %v1057, %v1048
        %v1062 = vld [vmem:[%s288] sm:$0xff]
        %v1064 = vunpack.c.l.b16 %v1062
        %v1065 = vunpack.c.h.b16 %v1062
        %v1066 = vpack.c.b16 %v1064, %v1064
        %v1067 = vpack.c.b16 %v1065, %v1065
        %1070 = vmatprep.subr.bf16.mxu0 %v1011
        %1071 = vmatpush1.bf16.msra.mxu0 %v1010
        %1072 = vmatprep.subr.bf16.mxu0 %v1013
        %1073 = vmatpush1.bf16.msra.mxu0 %v1012
        %1074 = vmatprep.subr.bf16.mxu0 %v1015
        %1075 = vmatpush1.bf16.msra.mxu0 %v1014
        %1076 = vmatprep.subr.bf16.mxu0 %v1017
        %1077 = vmatpush1.bf16.msra.mxu0 %v1016
        %1078 = vmatprep.subr.bf16.mxu0 %v1019
        %1079 = vmatpush1.bf16.msra.mxu0 %v1018
        %1080 = vmatprep.subr.bf16.mxu0 %v1021
        %1081 = vmatpush1.bf16.msra.mxu0 %v1020
        %1082 = vmatprep.subr.bf16.mxu0 %v1023
        %1083 = vmatpush1.bf16.msra.mxu0 %v1022
        %1084 = vmatprep.subr.bf16.mxu0 %v1025
        %1085 = vmatpush1.bf16.msra.mxu0 %v1024
        %1086 = vmatprep.subr.bf16.mxu0 %v1027
        %1087 = vmatpush1.bf16.msra.mxu0 %v1026
        %1088 = vmatprep.subr.bf16.mxu0 %v1029
        %1089 = vmatpush1.bf16.msra.mxu0 %v1028
        %1090 = vmatprep.subr.bf16.mxu0 %v1031
        %1091 = vmatpush1.bf16.msra.mxu0 %v1030
        %1092 = vmatprep.subr.bf16.mxu0 %v1033
        %1093 = vmatpush1.bf16.msra.mxu0 %v1032
        %1094 = vmatprep.subr.bf16.mxu0 %v1035
        %1095 = vmatpush1.bf16.msra.mxu0 %v1034
        %1096 = vmatprep.subr.bf16.mxu0 %v1037
        %1097 = vmatpush1.bf16.msra.mxu0 %v1036
        %1098 = vmatprep.subr.bf16.mxu0 %v1039
        %1099 = vmatpush1.bf16.msra.mxu0 %v1038
        %1100 = vmatprep.subr.bf16.mxu0 %v1041
        %1101 = vmatpush1.bf16.msra.mxu0 %v1040
        %1102 = vmatprep.mubr.bf16.mxu0 %v1067
        %1103 = vmatmul.mubr.bf16.gmra.mrb[0].mxu0 %v1066
        %v1104 = vpop.f32.mrb[0].mxu0
        %v1105 = vadd.f32 0.0, %v1104
        %v1106 = vpop.f32.mrb[0].mxu0
        %v1107 = vadd.f32 0.0, %v1106
        %v1108 = vpop.f32.mrb[0].mxu0
        %v1109 = vpop.f32.mrb[0].mxu0
        %1110 = vdwg.mxu0
        %v1111 = vadd.f32 %v1060, %v1105
        %v1112 = vadd.f32 %v1061, %v1107
        %1113 = vst [vmem:[#allocation2] sm:$0xff] %v1111
        %1114 = vst [vmem:[#allocation2 + $0x8] sm:$0xff] %v1112
        // Predicated region
        $region53: #{tpu_custom_call.1} parent=35 // pred_check
          %p1115 = pneg %p328
        $region54: #{tpu_custom_call.1} parent=35 // pred_check_branch
          %1117 = sbr.rel (%p1115) target = $region56
        $region55: #{tpu_custom_call.1} parent=35 // pred_region
          %s1118 = scalar_lea.vmem [#allocation2], 4
          %v1119 = vld [vmem:[%s1118] ss:$8 sm:$0x3]
          %v1120 = vrcp.pop %v1119
          %s1121 = sld [smem:[#allocation4]]
          %v1122 = vld [vmem:[#allocation2] sm:$0xf]
          %v1123 = vld [vmem:[#allocation2 + $0x8] sm:$0xf]
          %v1124 = vstv %s1121
          %v1125 = vmul.f32 %v1124, %v1122
          %v1126 = vmul.f32 %v1124, %v1123
          %v1128 = vlaneseq
          %v1129 = vshrl.u32 %v1128, 7
          %v1130 = vsub.s32 0, %v1129
          %v1131 = vrot.slane %v1120, %v1130
          %v1132 = vlaneseq
          %v1133 = vshrl.u32 %v1132, 7
          %v1134 = vsub.s32 1, %v1133
          %v1135 = vrot.slane %v1120, %v1134
          %v1138 = vmul.f32 %v1125, %v1131
          %v1139 = vmul.f32 %v1126, %v1135
          %v1142 = vcombine.low %v1138, %v1139
          %1144 = vst [vmem:[%s322] sm:$0xff] %v1142
        $region56: #{tpu_custom_call.1} parent=35 // pred_fallthru
          _
        %s1145 = sand.u32 %s159, 1
        %s1146 = scalar_lea.sflag [#allocation7], %s1145
        %s1147 = sand.u32 %s159, 1
        %s1148 = smul.addr %s1147, 8
        %s1149 = scalar_lea.vmem [#allocation11], %s1148
        // Predicated region
        $region57: #{tpu_custom_call.1} parent=35 // pred_check
          %p1150 = pneg %p169
        $region58: #{tpu_custom_call.1} parent=35 // pred_check_branch
          %1152 = sbr.rel (%p1150) target = $region60
        $region59: #{tpu_custom_call.1} parent=35 // pred_region
          %s1153 = smul.u32 2, %s31
          %s1155 = ssub.s32 128, 128
          %1156 = vsyncadd %s1146, %s1155
          %s1157 = smul.addr %s30, 2
          %s1158 = sadd.s32 %s1153, %s1157
          %s1159 = smul.addr %s1158, 64
          %s1160 = scalar_lea.hbm %s4, %s1159
          %s1162 = sshll.u32 %s1149, 4
          %s1163 = int_to_ptr.vmem [resolvable:$true] %s1162
          %1165 = dma.vmem_to_hbm [thread:$0]  %s1163, 128, %s1160, %s1146
        $region60: #{tpu_custom_call.1} parent=35 // pred_fallthru
          _
      $region36: #{tpu_custom_call.1} parent=5 // pred_fallthru
        _
      %p1166 = scmp.le.s32.totalorder 2, %s20
      // Predicated region
      $region61: #{tpu_custom_call.1} parent=5 // pred_check
        %p1167 = pneg %p1166
      $region62: #{tpu_custom_call.1} parent=5 // pred_check_branch
        %1169 = sbr.rel (%p1167) target = $region64
      $region63: #{tpu_custom_call.1} parent=5 // pred_region
        %s1170 = ssub.s32 %s20, 2
        // Predicated region
        $region65: #{tpu_custom_call.1} parent=63 // pred_check
          %p1171 = pneg %p175
        $region66: #{tpu_custom_call.1} parent=63 // pred_check_branch
          %1173 = sbr.rel (%p1171) target = $region68
        $region67: #{tpu_custom_call.1} parent=63 // pred_region
          %s1174 = sand.u32 %s160, 1
          %s1175 = scalar_lea.sflag [#allocation7], %s1174
          %s1176 = sand.u32 %s160, 1
          %s1177 = smul.addr %s1176, 8
          %s1178 = scalar_lea.vmem [#allocation11], %s1177
          %1179 = dma.done %s1175, 128
        $region68: #{tpu_custom_call.1} parent=63 // pred_fallthru
          _
      $region64: #{tpu_custom_call.1} parent=5 // pred_fallthru
        _
    $region6: #{tpu_custom_call.1} parent=1 // loop_footer
      %s24 = sadd.s32 1, %s20
    $region7: #{tpu_custom_call.1} parent=1 // loop_footer_branch
      %19 = sbr.rel target = $region3
    $region8: #{tpu_custom_call.1} parent=1 // loop_exit
      _
    %1180 = vsyncpa [#allocation6], 1
    %s1181 = scalar_lea.sflag [#allocation6], 1
    %1182 = vsyncpa %s1181, 1
    %1183 = vsyncpa [#allocation9], 1
    %s1184 = scalar_lea.sflag [#allocation9], 1
    %1185 = vsyncpa %s1184, 1
    %1186 = vsyncpa [#allocation7], 1
    %s1187 = scalar_lea.sflag [#allocation7], 1
    %1188 = vsyncpa %s1187, 1

</llo_original>
